<compile_context>
chip_gen: v6e
topology: v6e:2x2x1
jax: 0.10.0
libtpu: 0.0.40
codegen_flags: <defaults>
</compile_context>

<pallas_src>
import functools

import jax
import jax.numpy as jnp
from jax.experimental import pallas as pl
from jax.experimental.pallas import tpu as pltpu


def _round_up(v, m):
    return -(-v // m) * m


def _vmem_budget_bytes():
    # Per-generation VMEM sizing: 128 MiB on v5e/v6e, 64 MiB on v7x.
    try:
        cap = pltpu.get_tpu_info().vmem_capacity_bytes
    except Exception:
        cap = 64 << 20                       # conservative (v7x-sized) fallback
    return int(cap * 3 // 4)                 # headroom for compiler scratch


# ----------------------------------------------------------------------------
# aldlayer core: per-sample learned soft permutation of patches (Pallas kernel)
#   p_ref: (bt, P, P) bf16 exact row-softmax mixing matrices (softmax done in wrapper)
#   x_ref: (bt, P, tile_d) bf16 patches
# grid = (B/bt, D/tile_d) -- both axes parallel (no cross-step state).
# ----------------------------------------------------------------------------
def _ald_kernel(p_ref, x_ref, out_ref, *, use_mxu):
    if use_mxu:
        # MXU path: bf16 operands, f32 accumulation.
        out = jnp.einsum(
            "bij,bjd->bid", p_ref[...], x_ref[...],
            preferred_element_type=jnp.float32,
        )
    else:
        # Small-P (P=4) VPU path: bf16 broadcast-multiply (bf16 VALU on v6e/v7x; v5e
        # upcasts per slice), f32 accumulation.  Avoids a nearly-empty MXU tile and
        # keeps live vreg pressure low (no full f32 x materialization).
        p = p_ref[...]
        x = x_ref[...]
        n_patch = p.shape[-1]
        acc = (p[:, :, 0:1] * x[:, 0:1, :]).astype(jnp.float32)
        for k in range(1, n_patch):
            acc = acc + (p[:, :, k:k + 1] * x[:, k:k + 1, :]).astype(jnp.float32)
        out = acc
    out_ref[...] = out.astype(out_ref.dtype)


def ald_shuffle(perm, patches_bf16):
    """perm: (B, P, P) f32 exact softmax; patches_bf16: (B, P, D) bf16.
    Returns shuffled patches (B, P, D) bf16."""
    B, P, D = patches_bf16.shape
    budget = _vmem_budget_bytes()
    vmem_limit = min(budget, 96 << 20)

    per_sample = P * D * 2                          # bf16 bytes, whole-D block, 1 sample

    # Batch tile: biggest that keeps (in + out blocks) x 2 buffers under budget, capped
    # at 16, and kept small enough to leave >=2 batch grid steps (v7x has 2 TensorCores).
    bt_cap = max(1, budget // (4 * per_sample))
    bt_cap = min(bt_cap, 16, B)
    if B >= 2:
        bt_cap = min(bt_cap, max(1, B // 2))
    bt = 1
    for cand in range(bt_cap, 0, -1):               # divisor of B -> no batch pad copy
        if B % cand == 0:
            bt = cand
            break

    # Whole-D block when it fits VMEM (typical: C*H*W*2 bytes per sample); otherwise a
    # rare lane-aligned D split fallback.
    if per_sample <= budget // 4:
        tile_d, d_pad = D, D
        xb = patches_bf16
    else:
        n_split = -(-per_sample // (budget // 4))
        tile_d = _round_up(-(-D // n_split), 128)
        d_pad = _round_up(D, tile_d)
        xb = jnp.pad(patches_bf16, ((0, 0), (0, 0), (0, d_pad - D)))

    pb = perm.astype(jnp.bfloat16)
    grid = (B // bt, d_pad // tile_d)
    use_mxu = P >= 8
    kernel = functools.partial(_ald_kernel, use_mxu=use_mxu)

    cost = pl.CostEstimate(
        flops=2 * B * P * P * d_pad,
        transcendentals=0,
        bytes_accessed=2 * B * P * d_pad * 2 + B * P * P * 2,
    )

    out = pl.pallas_call(
        kernel,
        grid=grid,
        in_specs=[
            pl.BlockSpec((bt, P, P), lambda b, d: (b, 0, 0)),
            pl.BlockSpec((bt, P, tile_d), lambda b, d: (b, 0, d)),
        ],
        out_specs=pl.BlockSpec((bt, P, tile_d), lambda b, d: (b, 0, d)),
        out_shape=jax.ShapeDtypeStruct((B, P, d_pad), jnp.bfloat16),
        compiler_params=pltpu.CompilerParams(
            dimension_semantics=("parallel", "parallel"),
            vmem_limit_bytes=vmem_limit),
        cost_estimate=cost,
    )(pb, xb)

    if d_pad != D:
        out = out[:, :, :D]
    return out


# ----------------------------------------------------------------------------
# dataprocess / datareset: NCHW image <-> row-major patch sequence (plain JAX glue)
# ----------------------------------------------------------------------------
def dataprocess(x, n):
    B, C, H, W = x.shape
    ph, pw = H // n, W // n
    x = x.reshape(B, C, n, ph, n, pw)
    x = x.transpose(0, 2, 4, 1, 3, 5)                    # (B, n, n, C, ph, pw)
    return x.reshape(B, n * n, C * ph * pw)


def datareset(xp, H, W, n, C):
    B = xp.shape[0]
    ph, pw = H // n, W // n
    x = xp.reshape(B, n, n, C, ph, pw)
    x = x.transpose(0, 3, 1, 4, 2, 5)                    # (B, C, n, ph, n, pw)
    return x.reshape(B, C, H, W)


def ald_layer(weights, x_img, batch_seq, n):
    """aldlayer(n, num_train): returns (region-confused image bf16, soft permutations f32)."""
    B, C, H, W = x_img.shape
    # Per-sample gather + EXACT softmax in the wrapper (tiny: B*P*P elements).
    w_sel = jnp.take(weights, batch_seq, axis=0).astype(jnp.float32)   # (B, P, P)
    perm = jax.nn.softmax(w_sel, axis=-1)                              # exact, f32
    # bf16 BEFORE patchify: the transpose glue moves 2 B/elem instead of 4.
    patches = dataprocess(x_img.astype(jnp.bfloat16), n)               # (B, n*n, C*ph*pw)
    shuffled = ald_shuffle(perm, patches)
    x_rcm = datareset(shuffled, H, W, n, C)                            # (B, C, H, W) bf16
    return x_rcm, perm


# ----------------------------------------------------------------------------
# Fused classifier heads: one Pallas matmul for all heads (lane-dense output)
# ----------------------------------------------------------------------------
def _heads_kernel(x_ref, w_ref, b_ref, o_ref):
    o_ref[...] = (
        jnp.dot(x_ref[...], w_ref[...], preferred_element_type=jnp.float32)
        + b_ref[...]
    ).astype(o_ref.dtype)


def fused_linear(feats, w_cat, b_cat):
    N, C = feats.shape
    K = w_cat.shape[1]
    K_pad = _round_up(K, 128)                    # lane-dense stores
    tile_n = 128 if N > 128 else _round_up(N, 8)
    N_pad = _round_up(N, tile_n)

    # bf16 operands / f32 accumulation: halves the double-buffered weight VMEM (v5e's
    # 16 MiB scoped default) and feeds the fast MXU path.
    x = feats.astype(jnp.bfloat16)
    if N_pad != N:
        x = jnp.pad(x, ((0, N_pad - N), (0, 0)))
    w = w_cat.astype(jnp.bfloat16)
    b = b_cat.reshape(1, K).astype(jnp.float32)
    if K_pad != K:
        w = jnp.pad(w, ((0, 0), (0, K_pad - K)))
        b = jnp.pad(b, ((0, 0), (0, K_pad - K)))

    cost = pl.CostEstimate(
        flops=2 * N_pad * C * K_pad,
        transcendentals=0,
        bytes_accessed=(N_pad * C + C * K_pad) * 2 + (N_pad * K_pad + K_pad) * 4,
    )

    out = pl.pallas_call(
        _heads_kernel,
        grid=(N_pad // tile_n,),
        in_specs=[
            pl.BlockSpec((tile_n, C), lambda i: (i, 0)),
            pl.BlockSpec((C, K_pad), lambda i: (0, 0)),
            pl.BlockSpec((1, K_pad), lambda i: (0, 0)),
        ],
        out_specs=pl.BlockSpec((tile_n, K_pad), lambda i: (i, 0)),
        out_shape=jax.ShapeDtypeStruct((N_pad, K_pad), jnp.float32),
        compiler_params=pltpu.CompilerParams(dimension_semantics=("parallel",)),
        cost_estimate=cost,
    )(x, w, b)
    return out[:N, :K]


def _pooled_features(x):
    # TODO(synk): resnet50_pmg (load_model_ald pretrained backbone) cannot be reproduced;
    # stand-in = global average pool followed by a fused Pallas linear (below).
    return jnp.mean(x.astype(jnp.float32), axis=(2, 3))                 # (N, C)


def backbone_standin(params, feats):
    w_cat = jnp.concatenate(
        [params["w1"], params["w2"], params["w3"], params["wc"]], axis=1)
    b_cat = jnp.concatenate(
        [params["b1"], params["b2"], params["b3"], params["bc"]], axis=0)
    k = params["w1"].shape[1]
    out = fused_linear(feats, w_cat, b_cat)
    return (out[:, 0:k], out[:, k:2 * k], out[:, 2 * k:3 * k], out[:, 3 * k:4 * k])


# ----------------------------------------------------------------------------
# model4mulscale forward
# ----------------------------------------------------------------------------
def model4mulscale_forward(params, x, size, batch_seq, batchsize, train):
    result = None
    resultmul_4 = None
    resultmul_8 = None
    if train and size == 'mul8':
        x_4, resultmul_4 = ald_layer(params["mul4"], x, batch_seq, n=4)
        x_8, resultmul_8 = ald_layer(params["mul8"], x, batch_seq, n=8)
        # Pool each branch, concatenate only the tiny (B, C) features along batch
        # (equivalent to running the per-sample backbone on the concatenated batch).
        feats = jnp.concatenate(
            [_pooled_features(x_4), _pooled_features(x_8)], axis=0)
    else:
        if train:
            if size == '4':
                x, result = ald_layer(params["ald4"], x, batch_seq, n=4)
            elif size == '2':
                x, result = ald_layer(params["ald2"], x, batch_seq, n=2)
            elif size == '8':
                x, result = ald_layer(params["ald8"], x, batch_seq, n=8)
        feats = _pooled_features(x)

    xc1, xc2, xc3, x_concat = backbone_standin(params, feats)

    if size == '1':
        return (xc1, xc2, xc3, x_concat)
    elif size == 'mul8':
        return (xc1, xc2, xc3, x_concat, resultmul_4, resultmul_8)
    else:
        return (xc1, xc2, xc3, x_concat, result)


def init_params(key, num_classes, num_train, C):
    ks = jax.random.split(key, 9)
    p = {
        # aldlayer(2/4/8, num_train) and aldlayer4mulscale(num_train): mixing logits
        "ald2": 0.1 * jax.random.normal(ks[0], (num_train, 4, 4), jnp.float32),
        "ald4": 0.1 * jax.random.normal(ks[1], (num_train, 16, 16), jnp.float32),
        "ald8": 0.1 * jax.random.normal(ks[2], (num_train, 64, 64), jnp.float32),
        "mul4": 0.1 * jax.random.normal(ks[3], (num_train, 16, 16), jnp.float32),
        "mul8": 0.1 * jax.random.normal(ks[4], (num_train, 64, 64), jnp.float32),
    }
    for i, (wn, bn) in enumerate([("w1", "b1"), ("w2", "b2"), ("w3", "b3"), ("wc", "bc")]):
        p[wn] = 0.05 * jax.random.normal(ks[5 + i], (C, num_classes), jnp.float32)
        p[bn] = jnp.zeros((num_classes,), jnp.float32)
    return p


if __name__ == "__main__":
    num_classes = 10
    num_train = 4
    B, C, H, W = 2, 3, 16, 16        # small stand-in for 448x448 images

    key = jax.random.PRNGKey(0)
    kx, kp = jax.random.split(key)
    x = jax.random.normal(kx, (B, C, H, W), jnp.float32)
    params = init_params(kp, num_classes, num_train, C)
    batch_seq = jnp.array([0, 2], dtype=jnp.int32)

    # size '8' training path (aldlayer(8, num_train), P=64, MXU path)
    out8 = model4mulscale_forward(params, x, size='8', batch_seq=batch_seq,
                                  batchsize=B, train=True)
    jax.block_until_ready(out8)
    assert out8[0].shape == (B, num_classes)
    assert out8[4].shape == (B, 64, 64)

    # size '4' training path (aldlayer(4, num_train), P=16)
    out4 = model4mulscale_forward(params, x, size='4', batch_seq=batch_seq,
                                  batchsize=B, train=True)
    jax.block_until_ready(out4)
    assert out4[4].shape == (B, 16, 16)

    # size '2' training path (aldlayer(2, num_train), P=4, VPU path)
    out2 = model4mulscale_forward(params, x, size='2', batch_seq=batch_seq,
                                  batchsize=B, train=True)
    jax.block_until_ready(out2)
    assert out2[4].shape == (B, 4, 4)

    # size 'mul8' training path (aldlayer4mulscale: both 4x4 and 8x8 granularities)
    outm = model4mulscale_forward(params, x, size='mul8', batch_seq=batch_seq,
                                  batchsize=B, train=True)
    jax.block_until_ready(outm)
    assert outm[0].shape == (2 * B, num_classes)
    assert outm[4].shape == (B, 16, 16)
    assert outm[5].shape == (B, 64, 64)

    # size '1': no region confusion, 4-tuple output
    out1 = model4mulscale_forward(params, x, size='1', batch_seq=batch_seq,
                                  batchsize=B, train=True)
    jax.block_until_ready(out1)
    assert len(out1) == 4

    print("KERNEL_OK")
</pallas_src>

<mosaic_0001>
module attributes {stable_mosaic.version = 11 : i64} {
  func.func @_ald_kernel(%arg0: i32, %arg1: i32, %arg2: memref<1x64x64xbf16, #tpu.memory_space<vmem>>, %arg3: memref<1x64x12xbf16, #tpu.memory_space<vmem>>, %arg4: memref<1x64x12xbf16, #tpu.memory_space<vmem>>) attributes {dimension_semantics = [#tpu.dimension_semantics<parallel>, #tpu.dimension_semantics<parallel>], iteration_bounds = array<i64: 2, 1>, scalar_prefetch = 0 : i64, scratch_operands = 0 : i64, tpu.core_type = #tpu.core_type<tc>, window_params = [{transform_indices = @transform_0, window_bounds = array<i64: 1, 64, 64>}, {transform_indices = @transform_1, window_bounds = array<i64: 1, 64, 12>}, {transform_indices = @transform_2, window_bounds = array<i64: 1, 64, 12>}]} {
    %c0 = arith.constant 0 : index
    %c0_0 = arith.constant 0 : index
    %c0_1 = arith.constant 0 : index
    %0 = vector.load %arg2[%c0, %c0_0, %c0_1] : memref<1x64x64xbf16, #tpu.memory_space<vmem>>, vector<1x64x64xbf16>
    %c0_2 = arith.constant 0 : index
    %c0_3 = arith.constant 0 : index
    %c0_4 = arith.constant 0 : index
    %1 = vector.load %arg3[%c0_2, %c0_3, %c0_4] : memref<1x64x12xbf16, #tpu.memory_space<vmem>>, vector<1x64x12xbf16>
    "tpu.trace_start"() <{level = 10 : i32, message = "bij,bjd->bid"}> : () -> ()
    %cst = arith.constant dense<0.000000e+00> : vector<1x64x12xf32>
    %2 = tpu.matmul %0, %1, %cst {dimension_numbers = #tpu.dot_dimension_numbers<[2], [1], [1], [2], [0, 0, 0, 1, 1, 2], [0], [0]>} : vector<1x64x64xbf16>, vector<1x64x12xbf16>, vector<1x64x12xf32> -> vector<1x64x12xf32>
    "tpu.trace_stop"() : () -> ()
    %3 = arith.truncf %2 : vector<1x64x12xf32> to vector<1x64x12xbf16>
    %c0_5 = arith.constant 0 : index
    %c0_6 = arith.constant 0 : index
    %c0_7 = arith.constant 0 : index
    %4 = vector.load %arg4[%c0_5, %c0_6, %c0_7] : memref<1x64x12xbf16, #tpu.memory_space<vmem>>, vector<1x64x12xbf16>
    tpu.vector_store %arg4[%c0_5, %c0_6, %c0_7], %3 {strides = array<i32>} : memref<1x64x12xbf16, #tpu.memory_space<vmem>>, vector<1x64x12xbf16>,
    return
  }
  func.func @transform_0(%arg0: i32, %arg1: i32) -> (i32, i32, i32) {
    %c0_i32 = arith.constant 0 : i32
    %c0_i32_0 = arith.constant 0 : i32
    %c0_i32_1 = arith.constant 0 : i32
    return %arg0, %c0_i32, %c0_i32_0 : i32, i32, i32
  }
  func.func @transform_1(%arg0: i32, %arg1: i32) -> (i32, i32, i32) {
    %c0_i32 = arith.constant 0 : i32
    %c0_i32_0 = arith.constant 0 : i32
    return %arg0, %c0_i32, %arg1 : i32, i32, i32
  }
  func.func @transform_2(%arg0: i32, %arg1: i32) -> (i32, i32, i32) {
    %c0_i32 = arith.constant 0 : i32
    %c0_i32_0 = arith.constant 0 : i32
    return %arg0, %c0_i32, %arg1 : i32, i32, i32
  }
}

</mosaic_0001>

<llo_original>
// kernel: tpu_custom_call.1
$region0: #{tpu_custom_call.1}
  #allocation0 [shape = 'u32[]', space=smem, size = 0x4, offset = 0x4, fixed_abs, tag = 'smem constant byte address 0x4 - core index']
  #allocation1 [shape = 'u32[144,128]{1,0:T(1,128)}', space=vmem, size = 0x12000, scoped, tag = 'internal scratch']
  %s0 = inlined_call_operand.vmem [shape: bf16[2,64,64], index: 0, kind: input, shape index: {}]
  %s1 = inlined_call_operand.vmem [shape: bf16[2,64,12], index: 1, kind: input, shape index: {}]
  %s2 = inlined_call_operand.vmem [shape: bf16[2,64,12], index: 2, kind: output, shape index: {}]
  %s3 = sld [smem:[#allocation0]]
  $region41: #{tpu_custom_call.1} parent=0
    _
  %s5 = ssub.s32 1, %s3
  %s6 = scalar_select 0, %s5, %s3
  loop: start=0, step=1, limit=4
  $region2: #{tpu_custom_call.1} parent=0 // loop_pre_header
    _
  $region3: #{tpu_custom_call.1} parent=0 // loop_header
    %s8 = sphi 0, %s12
    %p9 = scmp.ge.s32.totalorder %s8, 4
    %s15 = sphi 0, %s27
    %s16 = sphi 0, %s23
    %s17 = sphi 0, %s15
    %s18 = sphi 0, %s16
    %s19 = sphi 0, %s17
    %s20 = sphi 0, %s18
    %s30 = sphi 0, %s32
    %s33 = sphi 0, %s30
    %s34 = sphi 0, %s33
    %s50 = sphi 0, %s34
    %s58 = sphi 0, %s60
    %s61 = sphi 0, %s58
    %s62 = sphi 0, %s61
    %s78 = sphi 0, %s62
    %s86 = sphi 0, %s88
    %s89 = sphi 0, %s86
    %s90 = sphi 0, %s89
    %s106 = sphi 0, %s90
  $region4: #{tpu_custom_call.1} parent=0 // loop_header_branch
    %11 = sbr.rel (%p9) target = $region8
  $region5: #{tpu_custom_call.1} parent=0 // loop_body
    %s13 = ssub.s32 %s8, 1
    %s14 = ssub.s32 %s8, 2
    %s21 = sadd.s32 1, %s16
    %p22 = scmp.ge.s32.totalorder %s21, 1
    %s23 = scalar_select %p22, 0, %s21
    %s24 = sadd.s32 1, %s15
    %s25 = scalar_select %p22, %s24, %s15
    %p26 = scmp.ge.s32.totalorder %s25, 2
    %s27 = scalar_select %p26, 0, %s25
    %s28 = ssub.s32 %s15, %s27
    %p29 = scmp.eq.s32.totalorder %s28, 0
    %s31 = sadd.s32 %s30, 1
    %s32 = scalar_select %p29, %s30, %s31
    %p35 = pneg %p29
    %p36 = scmp.eq.s32.totalorder %s8, 1
    %p37 = por %p35, %p36
    %p38 = scmp.ne.s32.totalorder %s30, %s33
    %p39 = scmp.eq.s32.totalorder %s8, 0
    %p40 = por %p38, %p39
    %p41 = scmp.ne.s32.totalorder %s30, %s33
    %p42 = scmp.eq.s32.totalorder %s13, 1
    %p43 = por %p41, %p42
    %p44 = scmp.ne.s32.totalorder %s33, %s34
    %p45 = scmp.eq.s32.totalorder %s13, 0
    %p46 = por %p44, %p45
    %p47 = scmp.ne.s32.totalorder %s33, %s34
    %p48 = scmp.eq.s32.totalorder %s14, 1
    %p49 = por %p47, %p48
    %p51 = scmp.ne.s32.totalorder %s34, %s50
    %p52 = scmp.eq.s32.totalorder %s14, 0
    %p53 = por %p51, %p52
    %s54 = ssub.s32 %s15, %s27
    %s55 = ssub.s32 %s16, %s23
    %s56 = sor.u32 %s54, %s55
    %p57 = scmp.eq.s32.totalorder %s56, 0
    %s59 = sadd.s32 %s58, 1
    %s60 = scalar_select %p57, %s58, %s59
    %p63 = pneg %p57
    %p64 = scmp.eq.s32.totalorder %s8, 1
    %p65 = por %p63, %p64
    %p66 = scmp.ne.s32.totalorder %s58, %s61
    %p67 = scmp.eq.s32.totalorder %s8, 0
    %p68 = por %p66, %p67
    %p69 = scmp.ne.s32.totalorder %s58, %s61
    %p70 = scmp.eq.s32.totalorder %s13, 1
    %p71 = por %p69, %p70
    %p72 = scmp.ne.s32.totalorder %s61, %s62
    %p73 = scmp.eq.s32.totalorder %s13, 0
    %p74 = por %p72, %p73
    %p75 = scmp.ne.s32.totalorder %s61, %s62
    %p76 = scmp.eq.s32.totalorder %s14, 1
    %p77 = por %p75, %p76
    %p79 = scmp.ne.s32.totalorder %s62, %s78
    %p80 = scmp.eq.s32.totalorder %s14, 0
    %p81 = por %p79, %p80
    %s82 = ssub.s32 %s15, %s27
    %s83 = ssub.s32 %s16, %s23
    %s84 = sor.u32 %s82, %s83
    %p85 = scmp.eq.s32.totalorder %s84, 0
    %s87 = sadd.s32 %s86, 1
    %s88 = scalar_select %p85, %s86, %s87
    %p91 = pneg %p85
    %p92 = scmp.eq.s32.totalorder %s8, 1
    %p93 = por %p91, %p92
    %p94 = scmp.ne.s32.totalorder %s86, %s89
    %p95 = scmp.eq.s32.totalorder %s8, 0
    %p96 = por %p94, %p95
    %p97 = scmp.ne.s32.totalorder %s86, %s89
    %p98 = scmp.eq.s32.totalorder %s13, 1
    %p99 = por %p97, %p98
    %p100 = scmp.ne.s32.totalorder %s89, %s90
    %p101 = scmp.eq.s32.totalorder %s13, 0
    %p102 = por %p100, %p101
    %p103 = scmp.ne.s32.totalorder %s89, %s90
    %p104 = scmp.eq.s32.totalorder %s14, 1
    %p105 = por %p103, %p104
    %p107 = scmp.ne.s32.totalorder %s90, %s106
    %p108 = scmp.eq.s32.totalorder %s14, 0
    %p109 = por %p107, %p108
    %p110 = scmp.le.s32.totalorder 1, %s8
    %p111 = scmp.lt.s32.totalorder %s8, 3
    %p112 = pnand %p110, %p111
    %p113 = pneg %p112
    // Predicated region
    $region9: #{tpu_custom_call.1} parent=5 // pred_check
      _
    $region10: #{tpu_custom_call.1} parent=5 // pred_check_branch
      %115 = sbr.rel (%p112) target = $region12
    $region11: #{tpu_custom_call.1} parent=5 // pred_region
      %s116 = ssub.s32 %s8, 1
    $region12: #{tpu_custom_call.1} parent=5 // pred_fallthru
      _
    %p117 = scmp.lt.s32.totalorder %s8, 2
    // Predicated region
    $region13: #{tpu_custom_call.1} parent=5 // pred_check
      %p118 = pneg %p117
    $region14: #{tpu_custom_call.1} parent=5 // pred_check_branch
      %120 = sbr.rel (%p118) target = $region16
    $region15: #{tpu_custom_call.1} parent=5 // pred_region
      // Predicated region
      $region17: #{tpu_custom_call.1} parent=15 // pred_check
        %p121 = pneg %p40
      $region18: #{tpu_custom_call.1} parent=15 // pred_check_branch
        %123 = sbr.rel (%p121) target = $region20
      $region19: #{tpu_custom_call.1} parent=15 // pred_region
        %p124 = scmp.lt.s32.totalorder %s15, 1
        %s125 = scalar_select %p124, %s15, 1
        %s126 = smul.addr %s125, 8
        %s127 = smul.addr %s126, 4
        %s128 = scalar_lea.vmem %s0, %s127
      $region20: #{tpu_custom_call.1} parent=15 // pred_fallthru
        _
      // Predicated region
      $region21: #{tpu_custom_call.1} parent=15 // pred_check
        %p129 = pneg %p68
      $region22: #{tpu_custom_call.1} parent=15 // pred_check_branch
        %131 = sbr.rel (%p129) target = $region24
      $region23: #{tpu_custom_call.1} parent=15 // pred_region
        %p132 = scmp.lt.s32.totalorder %s15, 1
        %s133 = scalar_select %p132, %s15, 1
        %p134 = scmp.lt.s32.totalorder %s16, 0
        %s135 = scalar_select %p134, %s16, 0
        %s136 = smul.addr %s133, 8
        %s137 = sadd.s32 %s135, %s136
        %s138 = smul.addr %s137, 4
        %s139 = scalar_lea.vmem %s1, %s138
      $region24: #{tpu_custom_call.1} parent=15 // pred_fallthru
        _
    $region16: #{tpu_custom_call.1} parent=5 // pred_fallthru
      _
    %p140 = scmp.le.s32.totalorder 1, %s8
    %p141 = scmp.lt.s32.totalorder %s8, 3
    %p142 = pnand %p140, %p141
    %p143 = pneg %p142
    // Predicated region
    $region25: #{tpu_custom_call.1} parent=5 // pred_check
      _
    $region26: #{tpu_custom_call.1} parent=5 // pred_check_branch
      %145 = sbr.rel (%p142) target = $region28
    $region27: #{tpu_custom_call.1} parent=5 // pred_region
      %s146 = ssub.s32 %s8, 1
      %p147 = scmp.lt.s32.totalorder %s17, 1
      %s148 = scalar_select %p147, %s17, 1
      %s149 = smul.addr %s148, 8
      %s150 = smul.addr %s149, 4
      %s151 = scalar_lea.vmem %s0, %s150
      %p152 = pneg %p46
      %p153 = pneg %p43
      %p154 = scmp.lt.s32.totalorder %s17, 1
      %s155 = scalar_select %p154, %s17, 1
      %p156 = scmp.lt.s32.totalorder %s18, 0
      %s157 = scalar_select %p156, %s18, 0
      %s158 = smul.addr %s155, 8
      %s159 = sadd.s32 %s157, %s158
      %s160 = smul.addr %s159, 4
      %s161 = scalar_lea.vmem %s1, %s160
      %p162 = pneg %p74
      %p163 = pneg %p71
      %p164 = pneg %p102
      %p165 = pneg %p99
      %p166 = scmp.lt.s32.totalorder %s17, 1
      %s167 = scalar_select %p166, %s17, 1
      %p168 = scmp.lt.s32.totalorder %s18, 0
      %s169 = scalar_select %p168, %s18, 0
      %s170 = smul.addr %s167, 8
      %s171 = sadd.s32 %s169, %s170
      %s172 = smul.addr %s171, 4
      %s173 = scalar_lea.vmem %s2, %s172
      %p174 = scmp.lt.s32.totalorder %s17, 1
      %s175 = scalar_select %p174, %s17, 1
      %s176 = smul.addr %s175, 8
      %s177 = smul.addr %s176, 4
      %s178 = scalar_lea.vmem %s0, %s177
      %p179 = scmp.lt.s32.totalorder %s17, 1
      %s180 = scalar_select %p179, %s17, 1
      %p181 = scmp.lt.s32.totalorder %s18, 0
      %s182 = scalar_select %p181, %s18, 0
      %s183 = smul.addr %s180, 8
      %s184 = sadd.s32 %s182, %s183
      %s185 = smul.addr %s184, 4
      %s186 = scalar_lea.vmem %s1, %s185
      %p187 = scmp.lt.s32.totalorder %s17, 1
      %s188 = scalar_select %p187, %s17, 1
      %p189 = scmp.lt.s32.totalorder %s18, 0
      %s190 = scalar_select %p189, %s18, 0
      %s191 = smul.addr %s188, 8
      %s192 = sadd.s32 %s190, %s191
      %s193 = smul.addr %s192, 4
      %s194 = scalar_lea.vmem %s2, %s193
      %v196 = vld [vmem:[%s178] sm:$0xf]
      %v197 = vld [vmem:[%s178 + $0x4] sm:$0xf]
      %v198 = vld [vmem:[%s178 + $0x8] sm:$0xf]
      %v199 = vld [vmem:[%s178 + $0xc] sm:$0xf]
      %v200 = vld [vmem:[%s178 + $0x10] sm:$0xf]
      %v201 = vld [vmem:[%s178 + $0x14] sm:$0xf]
      %v202 = vld [vmem:[%s178 + $0x18] sm:$0xf]
      %v203 = vld [vmem:[%s178 + $0x1c] sm:$0xf]
      %v204 = vld [vmem:[%s186] sm:$0xf]
      %v205 = vld [vmem:[%s186 + $0x4] sm:$0xf]
      %v206 = vld [vmem:[%s186 + $0x8] sm:$0xf]
      %v207 = vld [vmem:[%s186 + $0xc] sm:$0xf]
      %v208 = vld [vmem:[%s186 + $0x10] sm:$0xf]
      %v209 = vld [vmem:[%s186 + $0x14] sm:$0xf]
      %v210 = vld [vmem:[%s186 + $0x18] sm:$0xf]
      %v211 = vld [vmem:[%s186 + $0x1c] sm:$0xf]
      %v220 = vunpack.c.l.b16 %v196
      %v221 = vunpack.c.l.b16 %v197
      %v222 = vunpack.c.l.b16 %v198
      %v223 = vunpack.c.l.b16 %v199
      %v224 = vunpack.c.l.b16 %v200
      %v225 = vunpack.c.l.b16 %v201
      %v226 = vunpack.c.l.b16 %v202
      %v227 = vunpack.c.l.b16 %v203
      %v228 = vpack.c.b16 %v221, %v220
      %v229 = vpack.c.b16 %v223, %v222
      %v230 = vpack.c.b16 %v225, %v224
      %v231 = vpack.c.b16 %v227, %v226
      %v240 = vunpack.c.l.b16 %v204
      %v241 = vunpack.c.l.b16 %v205
      %v242 = vunpack.c.l.b16 %v206
      %v243 = vunpack.c.l.b16 %v207
      %v244 = vunpack.c.l.b16 %v208
      %v245 = vunpack.c.l.b16 %v209
      %v246 = vunpack.c.l.b16 %v210
      %v247 = vunpack.c.l.b16 %v211
      %v248 = vpack.c.b16 %v241, %v240
      %v249 = vpack.c.b16 %v243, %v242
      %v250 = vpack.c.b16 %v245, %v244
      %v251 = vpack.c.b16 %v247, %v246
      %vm256 = vcmask 523264
      %v258 = vsel %vm256, %v228, 0
      %v261 = vsel %vm256, %v229, 0
      %v264 = vsel %vm256, %v230, 0
      %v267 = vsel %vm256, %v231, 0
      %269 = vmatprep.subr.bf16.mxu0 0
      %270 = vmatpush1.bf16.msra.mxu0 0
      %271 = vmatprep.subr.bf16.mxu0 0
      %272 = vmatpush1.bf16.msra.mxu0 0
      %273 = vmatprep.subr.bf16.mxu0 0
      %274 = vmatpush1.bf16.msra.mxu0 0
      %275 = vmatprep.subr.bf16.mxu0 0
      %276 = vmatpush1.bf16.msra.mxu0 0
      %277 = vmatprep.subr.bf16.mxu0 0
      %278 = vmatpush1.bf16.msra.mxu0 %v251
      %279 = vmatprep.subr.bf16.mxu0 0
      %280 = vmatpush1.bf16.msra.mxu0 %v250
      %281 = vmatprep.subr.bf16.mxu0 0
      %282 = vmatpush1.bf16.msra.mxu0 %v249
      %283 = vmatprep.subr.bf16.mxu0 0
      %284 = vmatpush1.bf16.msra.mxu0 %v248
      %285 = vmatprep.subr.bf16.mxu0 0
      %286 = vmatpush2.bf16.msra.mxu0 0
      %287 = vmatprep.subr.bf16.mxu0 0
      %288 = vmatpush2.bf16.msra.mxu0 0
      %289 = vmatprep.subr.bf16.mxu0 0
      %290 = vmatpush2.bf16.msra.mxu0 0
      %291 = vmatprep.subr.bf16.mxu0 0
      %292 = vmatpush2.bf16.msra.mxu0 0
      %293 = vmatprep.subr.bf16.mxu0 0
      %294 = vmatpush2.bf16.msra.mxu0 0
      %295 = vmatprep.subr.bf16.mxu0 0
      %296 = vmatpush2.bf16.msra.mxu0 0
      %297 = vmatprep.subr.bf16.mxu0 0
      %298 = vmatpush2.bf16.msra.mxu0 0
      %299 = vmatprep.subr.bf16.mxu0 0
      %300 = vmatpush2.bf16.msra.mxu0 0
      %301 = vmatprep.mubr.bf16.mxu0 0
      %302 = vmatmul.mubr.bf16.gmra.mxu0 %v258
      %v303 = vpop.f32.mrf.mxu0
      %v304 = vadd.f32 0.0, %v303
      %v305 = vpop.f32.mrf.mxu0
      %v306 = vpop.f32.mrf.mxu0
      %v307 = vadd.f32 0.0, %v306
      %v308 = vpop.f32.mrf.mxu0
      %309 = vmatprep.mubr.bf16.mxu0 0
      %310 = vmatmul.mubr.bf16.gmra.mxu0 %v261
      %v311 = vpop.f32.mrf.mxu0
      %v312 = vadd.f32 0.0, %v311
      %v313 = vpop.f32.mrf.mxu0
      %v314 = vpop.f32.mrf.mxu0
      %v315 = vadd.f32 0.0, %v314
      %v316 = vpop.f32.mrf.mxu0
      %317 = vmatprep.mubr.bf16.mxu0 0
      %318 = vmatmul.mubr.bf16.gmra.mxu0 %v264
      %v319 = vpop.f32.mrf.mxu0
      %v320 = vadd.f32 0.0, %v319
      %v321 = vpop.f32.mrf.mxu0
      %v322 = vpop.f32.mrf.mxu0
      %v323 = vadd.f32 0.0, %v322
      %v324 = vpop.f32.mrf.mxu0
      %325 = vmatprep.mubr.bf16.mxu0 0
      %326 = vmatmul.mubr.bf16.gmra.mxu0 %v267
      %v327 = vpop.f32.mrf.mxu0
      %v328 = vadd.f32 0.0, %v327
      %v329 = vpop.f32.mrf.mxu0
      %v330 = vpop.f32.mrf.mxu0
      %v331 = vadd.f32 0.0, %v330
      %v332 = vpop.f32.mrf.mxu0
      %333 = vdwg.mxu0
      %v334 = vpack.c.bf16 %v307, %v304
      %v335 = vpack.c.bf16 %v315, %v312
      %v336 = vpack.c.bf16 %v323, %v320
      %v337 = vpack.c.bf16 %v331, %v328
      %v342 = vunpack.c.l.b16 %v334
      %v343 = vunpack.c.h.b16 %v334
      %v344 = vunpack.c.l.b16 %v335
      %v345 = vunpack.c.h.b16 %v335
      %v346 = vunpack.c.l.b16 %v336
      %v347 = vunpack.c.h.b16 %v336
      %v348 = vunpack.c.l.b16 %v337
      %v349 = vunpack.c.h.b16 %v337
      %v350 = vpack.c.b16 %v342, %v342
      %v351 = vpack.c.b16 %v343, %v343
      %v352 = vpack.c.b16 %v344, %v344
      %v353 = vpack.c.b16 %v345, %v345
      %v354 = vpack.c.b16 %v346, %v346
      %v355 = vpack.c.b16 %v347, %v347
      %v356 = vpack.c.b16 %v348, %v348
      %v357 = vpack.c.b16 %v349, %v349
      %vm366 = vcmask 93184
      %367 = vst.msk [vmem:[%s194] sm:$0xf] %vm366, %v350
      %368 = vst.msk [vmem:[%s194 + $0x4] sm:$0xf] %vm366, %v351
      %369 = vst.msk [vmem:[%s194 + $0x8] sm:$0xf] %vm366, %v352
      %370 = vst.msk [vmem:[%s194 + $0xc] sm:$0xf] %vm366, %v353
      %371 = vst.msk [vmem:[%s194 + $0x10] sm:$0xf] %vm366, %v354
      %372 = vst.msk [vmem:[%s194 + $0x14] sm:$0xf] %vm366, %v355
      %373 = vst.msk [vmem:[%s194 + $0x18] sm:$0xf] %vm366, %v356
      %374 = vst.msk [vmem:[%s194 + $0x1c] sm:$0xf] %vm366, %v357
      %p375 = scmp.lt.s32.totalorder %s17, 1
      %s376 = scalar_select %p375, %s17, 1
      %p377 = scmp.lt.s32.totalorder %s18, 0
      %s378 = scalar_select %p377, %s18, 0
      %s379 = smul.addr %s376, 8
      %s380 = sadd.s32 %s378, %s379
      %s381 = smul.addr %s380, 4
      %s382 = scalar_lea.vmem %s2, %s381
      // Predicated region
      $region29: #{tpu_custom_call.1} parent=27 // pred_check
        %p383 = pneg %p99
      $region30: #{tpu_custom_call.1} parent=27 // pred_check_branch
        %385 = sbr.rel (%p383) target = $region32
      $region31: #{tpu_custom_call.1} parent=27 // pred_region
        _
      $region32: #{tpu_custom_call.1} parent=27 // pred_fallthru
        _
    $region28: #{tpu_custom_call.1} parent=5 // pred_fallthru
      _
    %p386 = scmp.le.s32.totalorder 2, %s8
    // Predicated region
    $region33: #{tpu_custom_call.1} parent=5 // pred_check
      %p387 = pneg %p386
    $region34: #{tpu_custom_call.1} parent=5 // pred_check_branch
      %389 = sbr.rel (%p387) target = $region36
    $region35: #{tpu_custom_call.1} parent=5 // pred_region
      %s390 = ssub.s32 %s8, 2
      // Predicated region
      $region37: #{tpu_custom_call.1} parent=35 // pred_check
        %p391 = pneg %p105
      $region38: #{tpu_custom_call.1} parent=35 // pred_check_branch
        %393 = sbr.rel (%p391) target = $region40
      $region39: #{tpu_custom_call.1} parent=35 // pred_region
        %p394 = scmp.lt.s32.totalorder %s19, 1
        %s395 = scalar_select %p394, %s19, 1
        %p396 = scmp.lt.s32.totalorder %s20, 0
        %s397 = scalar_select %p396, %s20, 0
        %s398 = smul.addr %s395, 8
        %s399 = sadd.s32 %s397, %s398
        %s400 = smul.addr %s399, 4
        %s401 = scalar_lea.vmem %s2, %s400
      $region40: #{tpu_custom_call.1} parent=35 // pred_fallthru
        _
    $region36: #{tpu_custom_call.1} parent=5 // pred_fallthru
      _
  $region6: #{tpu_custom_call.1} parent=0 // loop_footer
    %s12 = sadd.s32 1, %s8
  $region7: #{tpu_custom_call.1} parent=0 // loop_footer_branch
    %7 = sbr.rel target = $region3
  $region8: #{tpu_custom_call.1} parent=0 // loop_exit
    _

</llo_original>
